<compile_context>
chip_gen: v7x
topology: tpu7x:2x2x1
jax: 0.10.0
libtpu: 0.0.40
codegen_flags: <defaults>
</compile_context>

<pallas_src>
import functools

import jax
import jax.numpy as jnp
from jax.experimental import pallas as pl
from jax.experimental.pallas import tpu as pltpu


def _round_up(a: int, b: int) -> int:
    return (a + b - 1) // b * b


# --------------------------------------------------------------------------------------
# Pass 1: per-point sum of squares for x (over F) and x_0 (over C0), f32 accumulation.
# Fully parallel over row tiles; boundary-tile garbage rows are dropped on writeback.
# --------------------------------------------------------------------------------------
def _sumsq_kernel(x_ref, x0_ref, ss_ref, ss0_ref):
    x = x_ref[...].astype(jnp.float32)       # (TP, F)
    x0 = x0_ref[...].astype(jnp.float32)     # (TP, C0)
    ss_ref[...] = jnp.sum(x * x, axis=-1, keepdims=True)    # (TP, 1)
    ss0_ref[...] = jnp.sum(x0 * x0, axis=-1, keepdims=True)  # (TP, 1)


# --------------------------------------------------------------------------------------
# Pass 2: apply per-point inverse factors (scale already folded for x) in f32, cast once.
# --------------------------------------------------------------------------------------
def _apply_kernel(x_ref, x0_ref, inv_ref, inv0_ref, scale0_ref, y_ref, y0_ref):
    inv = inv_ref[...]                        # (TP, 1) f32
    inv0 = inv0_ref[...]                      # (TP, 1) f32
    y = x_ref[...].astype(jnp.float32) * inv
    y_ref[...] = y.astype(y_ref.dtype)
    y0 = x0_ref[...].astype(jnp.float32) * inv0 * scale0_ref[...].astype(jnp.float32)
    y0_ref[...] = y0.astype(y0_ref.dtype)


# --------------------------------------------------------------------------------------
# Wrapper
# --------------------------------------------------------------------------------------
def layer_norm_0101(x, x_0, piece, scale, scale_0, *, num_groups, eps=1e-5, tile_p=None):
    """x: (P, C, L, M); x_0: (P, C0); piece: (P,) int group ids, REQUIRED in [0, num_groups)."""
    P, C, L, M = x.shape
    F = C * L * M
    C0 = x_0.shape[1]

    xf = x.reshape(P, F)                       # layout-preserving reshape, no copy
    piece_i = piece.astype(jnp.int32)

    # ---- per-generation VMEM budget ----
    try:
        vmem_cap = int(pltpu.get_tpu_info().vmem_capacity_bytes)
    except Exception:
        vmem_cap = 64 << 20                    # conservative fallback (v7x per-TC VMEM)
    # ~48 MiB on v7x (64 MiB physical), ~96 MiB on v5e/v6e (128 MiB physical).
    vmem_limit = int(max(32 << 20, min(vmem_cap * 3 // 4, 100 << 20)))

    itemsize = jnp.dtype(x.dtype).itemsize
    itemsize0 = jnp.dtype(x_0.dtype).itemsize
    sublane = max(8, 32 // itemsize)           # 8 for f32, 16 for bf16, 32 for int8/fp8

    if tile_p is None:
        # Per-row bytes moved by pass 2 (inputs + outputs); double-buffered (~2x); keep the
        # whole pipeline within ~half of the scoped limit to leave compiler headroom.
        in_row = F * itemsize + C0 * itemsize0 + 2 * 4
        out_row = F * itemsize + C0 * itemsize0
        row_bytes = in_row + out_row
        budget = vmem_limit // 2
        tile_p = budget // (2 * max(row_bytes, 1))
    tile_p = max(sublane, (int(tile_p) // sublane) * sublane)
    tile_p = min(tile_p, _round_up(P, sublane))
    num_tiles = pl.cdiv(P, tile_p)

    # ---- Pass 1: per-point sum of squares ----
    ss, ss0 = pl.pallas_call(
        _sumsq_kernel,
        out_shape=(jax.ShapeDtypeStruct((P, 1), jnp.float32),
                   jax.ShapeDtypeStruct((P, 1), jnp.float32)),
        grid=(num_tiles,),
        in_specs=[
            pl.BlockSpec((tile_p, F), lambda i: (i, 0)),     # x  (full trailing dim)
            pl.BlockSpec((tile_p, C0), lambda i: (i, 0)),    # x_0
        ],
        out_specs=(
            pl.BlockSpec((tile_p, 1), lambda i: (i, 0)),
            pl.BlockSpec((tile_p, 1), lambda i: (i, 0)),
        ),
        compiler_params=pltpu.CompilerParams(
            dimension_semantics=("parallel",),
            vmem_limit_bytes=vmem_limit),
        cost_estimate=pl.CostEstimate(
            flops=int(2 * P * (F + C0)),
            transcendentals=0,
            bytes_accessed=int(P * (F * itemsize + C0 * itemsize0) + 8 * P)),
    )(xf, x_0)

    # ---- Tiny O(P + G) glue in JAX: group reduction, finalize, per-point gather ----
    cnt = jnp.zeros((num_groups,), jnp.float32).at[piece_i].add(1.0)
    cnt = jnp.maximum(cnt, 1.0)
    g_ss = jnp.zeros((num_groups,), jnp.float32).at[piece_i].add(ss[:, 0])
    g_ss0 = jnp.zeros((num_groups,), jnp.float32).at[piece_i].add(ss0[:, 0])
    gmean = g_ss / (cnt * float(F))            # per-group mean of x^2
    gmean0 = g_ss0 / (cnt * float(C0))         # per-group mean of x_0^2

    scale_scalar = jnp.asarray(scale, jnp.float32).reshape(())
    # eps applied twice (inside sqrt and in the denominator) to match the PyTorch module.
    inv_g = scale_scalar / (jnp.sqrt(gmean + eps) + eps)     # (G,)  scale folded in
    inv0_g = 1.0 / (jnp.sqrt(gmean0 + eps) + eps)            # (G,)

    inv_p = inv_g[piece_i][:, None]            # (P, 1) f32 per-point factor
    inv0_p = inv0_g[piece_i][:, None]          # (P, 1) f32

    scale0_2 = jnp.asarray(scale_0).reshape(1, C0)

    # ---- Pass 2: normalize (single broadcast multiply per output) ----
    y_flat, y0 = pl.pallas_call(
        _apply_kernel,
        out_shape=(jax.ShapeDtypeStruct((P, F), x.dtype),
                   jax.ShapeDtypeStruct((P, C0), x_0.dtype)),
        grid=(num_tiles,),
        in_specs=[
            pl.BlockSpec((tile_p, F), lambda i: (i, 0)),     # x
            pl.BlockSpec((tile_p, C0), lambda i: (i, 0)),    # x_0
            pl.BlockSpec((tile_p, 1), lambda i: (i, 0)),     # inv (scale folded)
            pl.BlockSpec((tile_p, 1), lambda i: (i, 0)),     # inv0
            pl.BlockSpec((1, C0), lambda i: (0, 0)),         # scale_0 (resident)
        ],
        out_specs=(
            pl.BlockSpec((tile_p, F), lambda i: (i, 0)),
            pl.BlockSpec((tile_p, C0), lambda i: (i, 0)),
        ),
        compiler_params=pltpu.CompilerParams(
            dimension_semantics=("parallel",),
            vmem_limit_bytes=vmem_limit),
        cost_estimate=pl.CostEstimate(
            flops=int(P * (F + 2 * C0)),
            transcendentals=0,
            bytes_accessed=int(2 * P * (F * itemsize + C0 * itemsize0))),
    )(xf, x_0, inv_p, inv0_p, scale0_2)

    return y_flat.reshape(P, C, L, M), y0


# --------------------------------------------------------------------------------------
# Pure-JAX reference mirroring the PyTorch forward (type='0101')
# --------------------------------------------------------------------------------------
def _reference(x, x_0, piece, scale, scale_0, num_groups, eps=1e-5):
    P = x.shape[0]
    onehot = jax.nn.one_hot(piece, num_groups, dtype=jnp.float32)       # (P, G)
    cnt = jnp.maximum(onehot.sum(0), 1.0)                               # (G,)

    sq = (x.astype(jnp.float32) ** 2).reshape(P, -1).mean(-1)           # (P,)
    gmean = (onehot.T @ sq) / cnt                                       # (G,)
    std = jnp.sqrt(gmean[piece] + eps)[:, None, None, None]             # (P,1,1,1)

    sq0 = (x_0.astype(jnp.float32) ** 2).mean(-1)                       # (P,)
    gmean0 = (onehot.T @ sq0) / cnt
    std0 = jnp.sqrt(gmean0[piece] + eps)[:, None]                       # (P,1)

    y = x.astype(jnp.float32) / (std + eps) * jnp.asarray(scale, jnp.float32).reshape(1, 1, 1, 1)
    y0 = x_0.astype(jnp.float32) / (std0 + eps) * jnp.asarray(scale_0, jnp.float32).reshape(1, -1)
    return y.astype(x.dtype), y0.astype(x_0.dtype)


if __name__ == "__main__":
    # Small shapes consistent with the module: x (P, C, L, M), x_0 (P, Channel[1]).
    P, C, L, M = 16, 4, 2, 8
    Channel = [C, 8]
    C0 = Channel[1]
    num_groups = 3
    eps = 1e-5

    key = jax.random.PRNGKey(0)
    kx, kx0, k2x, k2x0 = jax.random.split(key, 4)
    x = jax.random.normal(kx, (P, C, L, M), dtype=jnp.float32)
    x_0 = jax.random.normal(kx0, (P, C0), dtype=jnp.float32)
    piece = jnp.array([0] * 6 + [1] * 5 + [2] * 5, dtype=jnp.int32)

    # Parameters, matching nn.Parameter(torch.ones(...)) init (d == '1'):
    scale = jnp.ones((1, 1, 1, 1), dtype=jnp.float32)
    scale_0 = jnp.ones((1, C0), dtype=jnp.float32)

    ln = jax.jit(layer_norm_0101, static_argnames=("num_groups", "eps", "tile_p"))

    y, y0 = ln(x, x_0, piece, scale, scale_0, num_groups=num_groups, eps=eps)
    jax.block_until_ready((y, y0))
    y_ref, y0_ref = _reference(x, x_0, piece, scale, scale_0, num_groups, eps)
    assert jnp.allclose(y, y_ref, atol=1e-5, rtol=1e-5)
    assert jnp.allclose(y0, y0_ref, atol=1e-5, rtol=1e-5)

    # Second check: P not a multiple of the tile and a forced small tile so the multi-step
    # grid + Pallas boundary-block (ragged last tile) path is exercised.
    P2 = 23
    x2 = jax.random.normal(k2x, (P2, C, L, M), dtype=jnp.float32)
    x2_0 = jax.random.normal(k2x0, (P2, C0), dtype=jnp.float32)
    piece_b = jnp.array([0] * 9 + [1] * 7 + [2] * 7, dtype=jnp.int32)
    y2, y2_0 = ln(x2, x2_0, piece_b, scale, scale_0,
                  num_groups=num_groups, eps=eps, tile_p=8)
    jax.block_until_ready((y2, y2_0))
    y2_ref, y2_0_ref = _reference(x2, x2_0, piece_b, scale, scale_0, num_groups, eps)
    assert jnp.allclose(y2, y2_ref, atol=1e-5, rtol=1e-5)
    assert jnp.allclose(y2_0, y2_0_ref, atol=1e-5, rtol=1e-5)

    print("KERNEL_OK")
</pallas_src>

<mosaic_0001>
module attributes {stable_mosaic.version = 11 : i64} {
  func.func private @main(%arg0: i32) attributes {dimension_semantics = [#tpu.dimension_semantics<core_parallel>], iteration_bounds = array<i64: 2>, tpu.core_type = #tpu.core_type<sc_scalar_subcore>, window_params = []} {
    return
  }
}

module attributes {stable_mosaic.version = 11 : i64} {
  func.func private @main(%arg0: i32) attributes {dimension_semantics = [#tpu.dimension_semantics<core_parallel>], iteration_bounds = array<i64: 2>, tpu.core_type = #tpu.core_type<sc_scalar_subcore>, window_params = []} {
    return
  }
}

module attributes {stable_mosaic.version = 11 : i64} {
  func.func @_sumsq_kernel(%arg0: i32, %arg1: memref<16x64xf32, #tpu.memory_space<vmem>>, %arg2: memref<16x8xf32, #tpu.memory_space<vmem>>, %arg3: memref<16x1xf32, #tpu.memory_space<vmem>>, %arg4: memref<16x1xf32, #tpu.memory_space<vmem>>) attributes {dimension_semantics = [#tpu.dimension_semantics<parallel>], iteration_bounds = array<i64: 1>, scalar_prefetch = 0 : i64, scratch_operands = 0 : i64, tpu.core_type = #tpu.core_type<tc>, window_params = [{transform_indices = @transform_0, window_bounds = array<i64: 16, 64>}, {transform_indices = @transform_1, window_bounds = array<i64: 16, 8>}, {transform_indices = @transform_2, window_bounds = array<i64: 16, 1>}, {transform_indices = @transform_3, window_bounds = array<i64: 16, 1>}]} {
    %c0 = arith.constant 0 : index
    %c0_0 = arith.constant 0 : index
    %0 = vector.load %arg1[%c0, %c0_0] : memref<16x64xf32, #tpu.memory_space<vmem>>, vector<16x64xf32>
    %c0_1 = arith.constant 0 : index
    %c0_2 = arith.constant 0 : index
    %1 = vector.load %arg2[%c0_1, %c0_2] : memref<16x8xf32, #tpu.memory_space<vmem>>, vector<16x8xf32>
    %2 = arith.mulf %0, %0 : vector<16x64xf32>
    %cst = arith.constant dense<0.000000e+00> : vector<16xf32>
    %3 = vector.multi_reduction <add>, %2, %cst [1] : vector<16x64xf32> to vector<16xf32>
    %4 = vector.shape_cast %3 : vector<16xf32> to vector<16x1xf32>
    %c0_3 = arith.constant 0 : index
    %c0_4 = arith.constant 0 : index
    %5 = vector.load %arg3[%c0_3, %c0_4] : memref<16x1xf32, #tpu.memory_space<vmem>>, vector<16x1xf32>
    tpu.vector_store %arg3[%c0_3, %c0_4], %4 {strides = array<i32>} : memref<16x1xf32, #tpu.memory_space<vmem>>, vector<16x1xf32>,
    %6 = arith.mulf %1, %1 : vector<16x8xf32>
    %cst_5 = arith.constant dense<0.000000e+00> : vector<16xf32>
    %7 = vector.multi_reduction <add>, %6, %cst_5 [1] : vector<16x8xf32> to vector<16xf32>
    %8 = vector.shape_cast %7 : vector<16xf32> to vector<16x1xf32>
    %c0_6 = arith.constant 0 : index
    %c0_7 = arith.constant 0 : index
    %9 = vector.load %arg4[%c0_6, %c0_7] : memref<16x1xf32, #tpu.memory_space<vmem>>, vector<16x1xf32>
    tpu.vector_store %arg4[%c0_6, %c0_7], %8 {strides = array<i32>} : memref<16x1xf32, #tpu.memory_space<vmem>>, vector<16x1xf32>,
    return
  }
  func.func @transform_0(%arg0: i32) -> (i32, i32) {
    %c0_i32 = arith.constant 0 : i32
    %c0_i32_0 = arith.constant 0 : i32
    return %arg0, %c0_i32 : i32, i32
  }
  func.func @transform_1(%arg0: i32) -> (i32, i32) {
    %c0_i32 = arith.constant 0 : i32
    %c0_i32_0 = arith.constant 0 : i32
    return %arg0, %c0_i32 : i32, i32
  }
  func.func @transform_2(%arg0: i32) -> (i32, i32) {
    %c0_i32 = arith.constant 0 : i32
    %c0_i32_0 = arith.constant 0 : i32
    return %arg0, %c0_i32 : i32, i32
  }
  func.func @transform_3(%arg0: i32) -> (i32, i32) {
    %c0_i32 = arith.constant 0 : i32
    %c0_i32_0 = arith.constant 0 : i32
    return %arg0, %c0_i32 : i32, i32
  }
}

module attributes {stable_mosaic.version = 11 : i64} {
  func.func @_apply_kernel(%arg0: i32, %arg1: memref<16x64xf32, #tpu.memory_space<vmem>>, %arg2: memref<16x8xf32, #tpu.memory_space<vmem>>, %arg3: memref<16x1xf32, #tpu.memory_space<vmem>>, %arg4: memref<16x1xf32, #tpu.memory_space<vmem>>, %arg5: memref<1x8xf32, #tpu.memory_space<vmem>>, %arg6: memref<16x64xf32, #tpu.memory_space<vmem>>, %arg7: memref<16x8xf32, #tpu.memory_space<vmem>>) attributes {dimension_semantics = [#tpu.dimension_semantics<parallel>], iteration_bounds = array<i64: 1>, scalar_prefetch = 0 : i64, scratch_operands = 0 : i64, tpu.core_type = #tpu.core_type<tc>, window_params = [{transform_indices = @transform_0, window_bounds = array<i64: 16, 64>}, {transform_indices = @transform_1, window_bounds = array<i64: 16, 8>}, {transform_indices = @transform_2, window_bounds = array<i64: 16, 1>}, {transform_indices = @transform_3, window_bounds = array<i64: 16, 1>}, {pipeline_mode = #tpu.pipeline_mode<synchronous>, transform_indices = @transform_4, window_bounds = array<i64: 1, 8>}, {transform_indices = @transform_5, window_bounds = array<i64: 16, 64>}, {transform_indices = @transform_6, window_bounds = array<i64: 16, 8>}]} {
    %c0 = arith.constant 0 : index
    %c0_0 = arith.constant 0 : index
    %0 = vector.load %arg3[%c0, %c0_0] : memref<16x1xf32, #tpu.memory_space<vmem>>, vector<16x1xf32>
    %c0_1 = arith.constant 0 : index
    %c0_2 = arith.constant 0 : index
    %1 = vector.load %arg4[%c0_1, %c0_2] : memref<16x1xf32, #tpu.memory_space<vmem>>, vector<16x1xf32>
    %c0_3 = arith.constant 0 : index
    %c0_4 = arith.constant 0 : index
    %2 = vector.load %arg1[%c0_3, %c0_4] : memref<16x64xf32, #tpu.memory_space<vmem>>, vector<16x64xf32>
    %3 = vector.broadcast %0 : vector<16x1xf32> to vector<16x64xf32>
    %4 = arith.mulf %2, %3 : vector<16x64xf32>
    %c0_5 = arith.constant 0 : index
    %c0_6 = arith.constant 0 : index
    %5 = vector.load %arg6[%c0_5, %c0_6] : memref<16x64xf32, #tpu.memory_space<vmem>>, vector<16x64xf32>
    tpu.vector_store %arg6[%c0_5, %c0_6], %4 {strides = array<i32>} : memref<16x64xf32, #tpu.memory_space<vmem>>, vector<16x64xf32>,
    %c0_7 = arith.constant 0 : index
    %c0_8 = arith.constant 0 : index
    %6 = vector.load %arg2[%c0_7, %c0_8] : memref<16x8xf32, #tpu.memory_space<vmem>>, vector<16x8xf32>
    %7 = vector.broadcast %1 : vector<16x1xf32> to vector<16x8xf32>
    %8 = arith.mulf %6, %7 : vector<16x8xf32>
    %c0_9 = arith.constant 0 : index
    %c0_10 = arith.constant 0 : index
    %9 = vector.load %arg5[%c0_9, %c0_10] : memref<1x8xf32, #tpu.memory_space<vmem>>, vector<1x8xf32>
    %10 = vector.broadcast %9 : vector<1x8xf32> to vector<16x8xf32>
    %11 = arith.mulf %8, %10 : vector<16x8xf32>
    %c0_11 = arith.constant 0 : index
    %c0_12 = arith.constant 0 : index
    %12 = vector.load %arg7[%c0_11, %c0_12] : memref<16x8xf32, #tpu.memory_space<vmem>>, vector<16x8xf32>
    tpu.vector_store %arg7[%c0_11, %c0_12], %11 {strides = array<i32>} : memref<16x8xf32, #tpu.memory_space<vmem>>, vector<16x8xf32>,
    return
  }
  func.func @transform_0(%arg0: i32) -> (i32, i32) {
    %c0_i32 = arith.constant 0 : i32
    %c0_i32_0 = arith.constant 0 : i32
    return %arg0, %c0_i32 : i32, i32
  }
  func.func @transform_1(%arg0: i32) -> (i32, i32) {
    %c0_i32 = arith.constant 0 : i32
    %c0_i32_0 = arith.constant 0 : i32
    return %arg0, %c0_i32 : i32, i32
  }
  func.func @transform_2(%arg0: i32) -> (i32, i32) {
    %c0_i32 = arith.constant 0 : i32
    %c0_i32_0 = arith.constant 0 : i32
    return %arg0, %c0_i32 : i32, i32
  }
  func.func @transform_3(%arg0: i32) -> (i32, i32) {
    %c0_i32 = arith.constant 0 : i32
    %c0_i32_0 = arith.constant 0 : i32
    return %arg0, %c0_i32 : i32, i32
  }
  func.func @transform_4(%arg0: i32) -> (i32, i32) {
    %c0_i32 = arith.constant 0 : i32
    %c0_i32_0 = arith.constant 0 : i32
    %c0_i32_1 = arith.constant 0 : i32
    return %c0_i32, %c0_i32_0 : i32, i32
  }
  func.func @transform_5(%arg0: i32) -> (i32, i32) {
    %c0_i32 = arith.constant 0 : i32
    %c0_i32_0 = arith.constant 0 : i32
    return %arg0, %c0_i32 : i32, i32
  }
  func.func @transform_6(%arg0: i32) -> (i32, i32) {
    %c0_i32 = arith.constant 0 : i32
    %c0_i32_0 = arith.constant 0 : i32
    return %arg0, %c0_i32 : i32, i32
  }
}

</mosaic_0001>

<llo_original>
// kernel: layer_norm_0101.2
$region0: #{layer_norm_0101.2}
  #allocation0 [shape = 'u32[]', space=smem, size = 0x4, offset = 0x4, fixed_abs, tag = 'smem constant byte address 0x4 - core index']
  #allocation1 [shape = 'u32[144,128]{1,0:T(1,128)}', space=vmem, size = 0x12000, scoped, tag = 'internal scratch']
  %s0 = inlined_call_operand.vmem [shape: f32[16,64], index: 0, kind: input, shape index: {}]
  %s1 = inlined_call_operand.vmem [shape: f32[16,8], index: 1, kind: input, shape index: {}]
  %s2 = inlined_call_operand.vmem [shape: f32[16,1], index: 2, kind: output, shape index: {0}]
  %s3 = inlined_call_operand.vmem [shape: f32[16,1], index: 3, kind: output, shape index: {1}]
  %4 = xla_tuple %s2, %s3
  %s5 = sld [smem:[#allocation0]]
  $region26: #{layer_norm_0101.2} parent=0
    _
  %s7 = ssub.s32 1, %s5
  %s8 = scalar_select 0, %s7, %s5
  // Predicated region
  $region2: #{layer_norm_0101.2} parent=0 // pred_check
    _
  $region3: #{layer_norm_0101.2} parent=0 // pred_check_branch
    %10 = sbr.rel (0) target = $region5
  $region4: #{layer_norm_0101.2} parent=0 // pred_region
    _
  $region5: #{layer_norm_0101.2} parent=0 // pred_fallthru
    _
  // Predicated region
  $region6: #{layer_norm_0101.2} parent=0 // pred_check
    _
  $region7: #{layer_norm_0101.2} parent=0 // pred_check_branch
    %12 = sbr.rel (0) target = $region9
  $region8: #{layer_norm_0101.2} parent=0 // pred_region
    _
  $region9: #{layer_norm_0101.2} parent=0 // pred_fallthru
    _
  %v13 = vld [vmem:[%s0] sm:$0xff]
  %v14 = vld [vmem:[%s0 + $0x8] sm:$0xff]
  %v15 = vld [vmem:[%s1] sm:$0xff]
  %v16 = vld [vmem:[%s1 + $0x8] sm:$0xff]
  %v17 = vmul.f32 %v13, %v13
  %v18 = vmul.f32 %v14, %v14
  %vm19 = vcmask 523264
  %v20 = vsel %vm19, %v17, 0.0
  %21 = vadd.xlane.f32.xlu0 %v20
  %v22 = vpop.xlane.xlu0 %21
  %v23 = vsel %vm19, %v18, 0.0
  %24 = vadd.xlane.f32.xlu0 %v23
  %v25 = vpop.xlane.xlu0 %24
  %vm26 = vcmask 7168
  %27 = vst.msk [vmem:[%s2] sm:$0xff] %vm26, %v22
  %28 = vst.msk [vmem:[%s2 + $0x8] sm:$0xff] %vm26, %v25
  %v29 = vmul.f32 %v15, %v15
  %v30 = vmul.f32 %v16, %v16
  %vm31 = vcmask 64512
  %v32 = vsel %vm31, %v29, 0.0
  %33 = vadd.xlane.f32.xlu0 %v32
  %v34 = vpop.xlane.xlu0 %33
  %v35 = vsel %vm31, %v30, 0.0
  %36 = vadd.xlane.f32.xlu0 %v35
  %v37 = vpop.xlane.xlu0 %36
  %38 = vst.msk [vmem:[%s3] sm:$0xff] %vm26, %v34
  %39 = vst.msk [vmem:[%s3 + $0x8] sm:$0xff] %vm26, %v37
  // Predicated region
  $region10: #{layer_norm_0101.2} parent=0 // pred_check
    _
  $region11: #{layer_norm_0101.2} parent=0 // pred_check_branch
    %41 = sbr.rel (0) target = $region13
  $region12: #{layer_norm_0101.2} parent=0 // pred_region
    _
  $region13: #{layer_norm_0101.2} parent=0 // pred_fallthru
    _
  // Predicated region
  $region14: #{layer_norm_0101.2} parent=0 // pred_check
    _
  $region15: #{layer_norm_0101.2} parent=0 // pred_check_branch
    %43 = sbr.rel (0) target = $region17
  $region16: #{layer_norm_0101.2} parent=0 // pred_region
    _
  $region17: #{layer_norm_0101.2} parent=0 // pred_fallthru
    _
  // Predicated region
  $region18: #{layer_norm_0101.2} parent=0 // pred_check
    _
  $region19: #{layer_norm_0101.2} parent=0 // pred_check_branch
    %45 = sbr.rel (0) target = $region21
  $region20: #{layer_norm_0101.2} parent=0 // pred_region
    _
  $region21: #{layer_norm_0101.2} parent=0 // pred_fallthru
    _
  // Predicated region
  $region22: #{layer_norm_0101.2} parent=0 // pred_check
    _
  $region23: #{layer_norm_0101.2} parent=0 // pred_check_branch
    %47 = sbr.rel (0) target = $region25
  $region24: #{layer_norm_0101.2} parent=0 // pred_region
    _
  $region25: #{layer_norm_0101.2} parent=0 // pred_fallthru
    _

// kernel: layer_norm_0101.3
$region0: #{layer_norm_0101.3}
  #allocation0 [shape = 'u32[]', space=smem, size = 0x4, offset = 0x4, fixed_abs, tag = 'smem constant byte address 0x4 - core index']
  #allocation1 [shape = 'u32[144,128]{1,0:T(1,128)}', space=vmem, size = 0x12000, scoped, tag = 'internal scratch']
  %s0 = inlined_call_operand.vmem [shape: f32[16,64], index: 0, kind: input, shape index: {}]
  %s1 = inlined_call_operand.vmem [shape: f32[16,8], index: 1, kind: input, shape index: {}]
  %s2 = inlined_call_operand.vmem [shape: f32[16,1], index: 2, kind: input, shape index: {}]
  %s3 = inlined_call_operand.vmem [shape: f32[16,1], index: 3, kind: input, shape index: {}]
  %s4 = inlined_call_operand.vmem [shape: f32[1,8], index: 4, kind: input, shape index: {}]
  %s5 = inlined_call_operand.vmem [shape: f32[16,64], index: 5, kind: output, shape index: {0}]
  %s6 = inlined_call_operand.vmem [shape: f32[16,8], index: 6, kind: output, shape index: {1}]
  %7 = xla_tuple %s5, %s6
  %s8 = sld [smem:[#allocation0]]
  $region38: #{layer_norm_0101.3} parent=0
    _
  %s10 = ssub.s32 1, %s8
  %s11 = scalar_select 0, %s10, %s8
  // Predicated region
  $region2: #{layer_norm_0101.3} parent=0 // pred_check
    _
  $region3: #{layer_norm_0101.3} parent=0 // pred_check_branch
    %13 = sbr.rel (0) target = $region5
  $region4: #{layer_norm_0101.3} parent=0 // pred_region
    _
  $region5: #{layer_norm_0101.3} parent=0 // pred_fallthru
    _
  // Predicated region
  $region6: #{layer_norm_0101.3} parent=0 // pred_check
    _
  $region7: #{layer_norm_0101.3} parent=0 // pred_check_branch
    %15 = sbr.rel (0) target = $region9
  $region8: #{layer_norm_0101.3} parent=0 // pred_region
    _
  $region9: #{layer_norm_0101.3} parent=0 // pred_fallthru
    _
  // Predicated region
  $region10: #{layer_norm_0101.3} parent=0 // pred_check
    _
  $region11: #{layer_norm_0101.3} parent=0 // pred_check_branch
    %17 = sbr.rel (0) target = $region13
  $region12: #{layer_norm_0101.3} parent=0 // pred_region
    _
  $region13: #{layer_norm_0101.3} parent=0 // pred_fallthru
    _
  // Predicated region
  $region14: #{layer_norm_0101.3} parent=0 // pred_check
    _
  $region15: #{layer_norm_0101.3} parent=0 // pred_check_branch
    %19 = sbr.rel (0) target = $region17
  $region16: #{layer_norm_0101.3} parent=0 // pred_region
    _
  $region17: #{layer_norm_0101.3} parent=0 // pred_fallthru
    _
  // Predicated region
  $region18: #{layer_norm_0101.3} parent=0 // pred_check
    _
  $region19: #{layer_norm_0101.3} parent=0 // pred_check_branch
    %21 = sbr.rel (0) target = $region21
  $region20: #{layer_norm_0101.3} parent=0 // pred_region
    _
  $region21: #{layer_norm_0101.3} parent=0 // pred_fallthru
    _
  %v22 = vld [vmem:[%s2] sm:$0xff]
  %v23 = vld [vmem:[%s2 + $0x8] sm:$0xff]
  %v24 = vld [vmem:[%s3] sm:$0xff]
  %v25 = vld [vmem:[%s3 + $0x8] sm:$0xff]
  %v26 = vld [vmem:[%s0] sm:$0xff]
  %v27 = vld [vmem:[%s0 + $0x8] sm:$0xff]
  %29 = vset.pattern.permute.xlu0 0
  %30 = vperm.xlu0 %29, %v22
  %v31 = vpop.permute.xlu0 %30
  %34 = vset.pattern.permute.xlu0 0
  %35 = vperm.xlu0 %34, %v23
  %v36 = vpop.permute.xlu0 %35
  %v38 = vmul.f32 %v26, %v31
  %v39 = vmul.f32 %v27, %v36
  %vm40 = vcmask 523264
  %41 = vst.msk [vmem:[%s5] sm:$0xff] %vm40, %v38
  %42 = vst.msk [vmem:[%s5 + $0x8] sm:$0xff] %vm40, %v39
  %v43 = vld [vmem:[%s1] sm:$0xff]
  %v44 = vld [vmem:[%s1 + $0x8] sm:$0xff]
  %46 = vset.pattern.permute.xlu0 0
  %47 = vperm.xlu0 %46, %v24
  %v48 = vpop.permute.xlu0 %47
  %51 = vset.pattern.permute.xlu0 0
  %52 = vperm.xlu0 %51, %v25
  %v53 = vpop.permute.xlu0 %52
  %v55 = vmul.f32 %v43, %v48
  %v56 = vmul.f32 %v44, %v53
  %v57 = vld [vmem:[%s4] sm:$0x1]
  %v59 = vlaneseq
  %v60 = vshrl.u32 %v59, 7
  %v61 = vsub.s32 0, %v60
  %v62 = vrot.slane %v57, %v61
  %v64 = vmul.f32 %v55, %v62
  %v65 = vmul.f32 %v56, %v62
  %vm66 = vcmask 64512
  %67 = vst.msk [vmem:[%s6] sm:$0xff] %vm66, %v64
  %68 = vst.msk [vmem:[%s6 + $0x8] sm:$0xff] %vm66, %v65
  // Predicated region
  $region22: #{layer_norm_0101.3} parent=0 // pred_check
    _
  $region23: #{layer_norm_0101.3} parent=0 // pred_check_branch
    %70 = sbr.rel (0) target = $region25
  $region24: #{layer_norm_0101.3} parent=0 // pred_region
    _
  $region25: #{layer_norm_0101.3} parent=0 // pred_fallthru
    _
  // Predicated region
  $region26: #{layer_norm_0101.3} parent=0 // pred_check
    _
  $region27: #{layer_norm_0101.3} parent=0 // pred_check_branch
    %72 = sbr.rel (0) target = $region29
  $region28: #{layer_norm_0101.3} parent=0 // pred_region
    _
  $region29: #{layer_norm_0101.3} parent=0 // pred_fallthru
    _
  // Predicated region
  $region30: #{layer_norm_0101.3} parent=0 // pred_check
    _
  $region31: #{layer_norm_0101.3} parent=0 // pred_check_branch
    %74 = sbr.rel (0) target = $region33
  $region32: #{layer_norm_0101.3} parent=0 // pred_region
    _
  $region33: #{layer_norm_0101.3} parent=0 // pred_fallthru
    _
  // Predicated region
  $region34: #{layer_norm_0101.3} parent=0 // pred_check
    _
  $region35: #{layer_norm_0101.3} parent=0 // pred_check_branch
    %76 = sbr.rel (0) target = $region37
  $region36: #{layer_norm_0101.3} parent=0 // pred_region
    _
  $region37: #{layer_norm_0101.3} parent=0 // pred_fallthru
    _

</llo_original>
